<compile_context>
chip_gen: v7x
topology: tpu7x:2x2x1
jax: 0.10.0
libtpu: 0.0.40
codegen_flags: <defaults>
</compile_context>

<pallas_src>
import jax
import jax.numpy as jnp
from jax.experimental import pallas as pl
from jax.experimental.pallas import tpu as pltpu

BN_EPS = 1e-5


def _round_up(x, m):
    return ((x + m - 1) // m) * m


# --------------------------------------------------------------------------- #
# Kernel
# --------------------------------------------------------------------------- #
def mlp_kernel(x_ref, w1_ref, b1_ref, w2_ref, b2_ref, w3_ref, b3_ref, o_ref):
    cdt = x_ref.dtype
    x = x_ref[...]                                                  # (TB, in_dim)

    # ---- layer 1: (Linear + folded BN) -> ReLU (Dropout = identity in eval) ----
    h = jnp.dot(x, w1_ref[...], preferred_element_type=jnp.float32) + b1_ref[...]
    h = jnp.maximum(h, 0.0).astype(cdt)
    # TODO(synk): training-mode Dropout / BatchNorm batch-statistics not implemented
    # (eval-mode forward only).

    # ---- layer 2: (Linear + folded BN) -> ReLU ----
    h = jnp.dot(h, w2_ref[...], preferred_element_type=jnp.float32) + b2_ref[...]
    h = jnp.maximum(h, 0.0)                                         # (TB, H2P) f32

    # ---- output layer (out_dim == 1): VPU multiply + lane reduce, b3 from SMEM ----
    out_row = jnp.sum(h * w3_ref[...].astype(jnp.float32), axis=-1) + b3_ref[0]
    o_ref[...] = out_row.reshape(o_ref.shape).astype(o_ref.dtype)


# --------------------------------------------------------------------------- #
# Parameter prep: fold BatchNorm (running stats) into the Linears, pad lane dims
# to 128 (zero pad -> numerically exact), cast weights to the compute dtype.
# --------------------------------------------------------------------------- #
def fold_bn_params(p, compute_dtype=jnp.bfloat16, eps=BN_EPS):
    in_dim, h1 = p["w1"].shape
    h2 = p["w2"].shape[1]
    h1p, h2p = _round_up(h1, 128), _round_up(h2, 128)

    s1 = p["g1"] * jax.lax.rsqrt(p["v1"] + eps)                      # (1, h1)
    w1f = jnp.zeros((in_dim, h1p), jnp.float32).at[:, :h1].set(p["w1"] * s1)
    b1f = jnp.zeros((1, h1p), jnp.float32).at[:, :h1].set(
        (p["b1"] - p["m1"]) * s1 + p["be1"])

    s2 = p["g2"] * jax.lax.rsqrt(p["v2"] + eps)                      # (1, h2)
    w2f = jnp.zeros((h1p, h2p), jnp.float32).at[:h1, :h2].set(p["w2"] * s2)
    b2f = jnp.zeros((1, h2p), jnp.float32).at[:, :h2].set(
        (p["b2"] - p["m2"]) * s2 + p["be2"])

    w3r = jnp.zeros((1, h2p), jnp.float32).at[:, :h2].set(p["w3"].reshape(1, -1))
    b3 = p["b3"].reshape(1).astype(jnp.float32)                      # SMEM scalar

    return (w1f.astype(compute_dtype), b1f,
            w2f.astype(compute_dtype), b2f,
            w3r.astype(compute_dtype), b3)


# --------------------------------------------------------------------------- #
# Wrapper
# --------------------------------------------------------------------------- #
def _vmem_capacity_bytes():
    try:
        return int(pltpu.get_tpu_info().vmem_capacity_bytes)
    except Exception:
        return 64 << 20   # conservative (v7x-class) default if the query fails


def rain_prediction_forward(x, params, block_rows=None, compute_dtype=jnp.bfloat16):
    """x: (batch, input_dim). params: dict from init_params. Returns (batch, 1) f32."""
    batch, in_dim = x.shape
    assert params["w3"].shape[1] == 1, "lane-reduce output path assumes output_dim == 1"

    w1f, b1f, w2f, b2f, w3r, b3 = fold_bn_params(params, compute_dtype)
    h1p, h2p = w1f.shape[1], w2f.shape[1]
    x = x.astype(compute_dtype)

    # ---- tile selection (generation-aware VMEM sizing) ----
    vmem_cap = _vmem_capacity_bytes()
    if vmem_cap <= (64 << 20):                 # v7x-class: 64 MiB physical VMEM
        gen_max_tb, vmem_limit = 8192, 48 << 20
    else:                                      # v5e / v6e: 128 MiB physical VMEM
        gen_max_tb, vmem_limit = 16384, 96 << 20

    auto = block_rows is None
    tb = min(gen_max_tb if auto else block_rows, gen_max_tb, max(batch, 8))
    tb = max(8, _round_up(tb, 8))
    # Keep >= 2 grid tiles when the batch allows it, so v7x's 2nd TC has work.
    if auto and batch >= 64 and pl.cdiv(batch, tb) < 2:
        tb = max(8, _round_up((batch + 1) // 2, 8))

    padded = pl.cdiv(batch, tb) * tb
    if padded != batch:
        x = jnp.pad(x, ((0, padded - batch), (0, 0)))
    num_tiles = padded // tb

    param_bytes = sum(int(a.size) * a.dtype.itemsize
                      for a in (w1f, b1f, w2f, b2f, w3r, b3))
    cost = pl.CostEstimate(
        flops=2 * padded * (in_dim * h1p + h1p * h2p + h2p),
        transcendentals=0,
        bytes_accessed=padded * (in_dim * x.dtype.itemsize + 4) + param_bytes,
    )

    def call(single_buffer_consts, aligned_out):
        cbuf = {"pipeline_mode": pl.Buffered(1)} if single_buffer_consts else {}
        use_aligned = aligned_out and (tb % 1024 == 0)
        if use_aligned:   # fully (8,128)-aligned output blocks -> unmasked stores
            out_block, out_shape = (8, tb // 8), (num_tiles * 8, tb // 8)
        else:             # lane-dense (1, tb) output row per tile
            out_block, out_shape = (1, tb), (num_tiles, tb)

        in_specs = [
            pl.BlockSpec((tb, in_dim), lambda i: (i, 0)),             # x: batch-tiled
            pl.BlockSpec((in_dim, h1p), lambda i: (0, 0), **cbuf),    # w1 (folded)
            pl.BlockSpec((1, h1p),      lambda i: (0, 0), **cbuf),    # b1 (folded)
            pl.BlockSpec((h1p, h2p),    lambda i: (0, 0), **cbuf),    # w2 (folded)
            pl.BlockSpec((1, h2p),      lambda i: (0, 0), **cbuf),    # b2 (folded)
            pl.BlockSpec((1, h2p),      lambda i: (0, 0), **cbuf),    # w3 lane row
            pl.BlockSpec(memory_space=pltpu.MemorySpace.SMEM),        # b3 scalar
        ]
        return pl.pallas_call(
            mlp_kernel,
            out_shape=jax.ShapeDtypeStruct(out_shape, jnp.float32),
            grid=(num_tiles,),
            in_specs=in_specs,
            out_specs=pl.BlockSpec(out_block, lambda i: (i, 0)),
            compiler_params=pltpu.CompilerParams(
                dimension_semantics=("parallel",),
                vmem_limit_bytes=vmem_limit,
            ),
            cost_estimate=cost,
        )(x, w1f, b1f, w2f, b2f, w3r, b3)

    # Preferred config first; degrade gracefully if an optional optimization is
    # not supported by the installed jax/libtpu.
    out_slab, last_err = None, None
    for single_buf, aligned in ((True, True), (True, False), (False, False)):
        try:
            out_slab = jax.block_until_ready(call(single_buf, aligned))
            break
        except Exception as e:      # pragma: no cover - robustness fallback
            last_err = e
    if out_slab is None:
        raise last_err

    # flatten (tile-major, row-major within tile) -> (batch, 1), drop padding
    return out_slab.reshape(padded, 1)[:batch]


# --------------------------------------------------------------------------- #
# Synthetic params + pure-JAX reference (PyTorch eval-mode semantics, un-folded BN)
# --------------------------------------------------------------------------- #
def init_params(key, input_dim=6, hidden_dims=(64, 32), output_dim=1):
    ks = jax.random.split(key, 16)
    h1, h2 = hidden_dims
    p = {}
    p["w1"] = jax.random.normal(ks[0], (input_dim, h1), jnp.float32) * 0.1
    p["b1"] = 0.01 * jax.random.normal(ks[1], (1, h1), jnp.float32)
    p["g1"] = 1.0 + 0.1 * jax.random.normal(ks[2], (1, h1), jnp.float32)
    p["be1"] = 0.01 * jax.random.normal(ks[3], (1, h1), jnp.float32)
    p["m1"] = 0.05 * jax.random.normal(ks[4], (1, h1), jnp.float32)
    p["v1"] = 1.0 + 0.1 * jnp.abs(jax.random.normal(ks[5], (1, h1), jnp.float32))
    p["w2"] = jax.random.normal(ks[6], (h1, h2), jnp.float32) * 0.1
    p["b2"] = 0.01 * jax.random.normal(ks[7], (1, h2), jnp.float32)
    p["g2"] = 1.0 + 0.1 * jax.random.normal(ks[8], (1, h2), jnp.float32)
    p["be2"] = 0.01 * jax.random.normal(ks[9], (1, h2), jnp.float32)
    p["m2"] = 0.05 * jax.random.normal(ks[10], (1, h2), jnp.float32)
    p["v2"] = 1.0 + 0.1 * jnp.abs(jax.random.normal(ks[11], (1, h2), jnp.float32))
    p["w3"] = jax.random.normal(ks[12], (h2, output_dim), jnp.float32) * 0.1
    p["b3"] = 0.01 * jax.random.normal(ks[13], (1, output_dim), jnp.float32)
    return p


def reference_forward(x, p):
    h = x @ p["w1"] + p["b1"]
    h = (h - p["m1"]) / jnp.sqrt(p["v1"] + BN_EPS) * p["g1"] + p["be1"]
    h = jnp.maximum(h, 0.0)
    h = h @ p["w2"] + p["b2"]
    h = (h - p["m2"]) / jnp.sqrt(p["v2"] + BN_EPS) * p["g2"] + p["be2"]
    h = jnp.maximum(h, 0.0)
    return h @ p["w3"] + p["b3"]


# --------------------------------------------------------------------------- #
# Main
# --------------------------------------------------------------------------- #
if __name__ == "__main__":
    key = jax.random.PRNGKey(0)
    k_p, k1, k2, k3 = jax.random.split(key, 4)

    input_dim, hidden_dims, output_dim = 6, (64, 32), 1
    params = init_params(k_p, input_dim, hidden_dims, output_dim)

    # 1) small batch, f32 compute path: tight check of folded-BN / kernel math.
    x1 = jax.random.normal(k1, (8, input_dim), jnp.float32)
    o1 = jax.block_until_ready(
        rain_prediction_forward(x1, params, compute_dtype=jnp.float32))
    r1 = reference_forward(x1, params)
    assert o1.shape == (8, 1), o1.shape
    assert jnp.allclose(o1, r1, atol=5e-3, rtol=5e-3), (o1, r1)

    # 2) non-multiple batch, explicit small tile: batch padding + multi-tile grid,
    #    bf16 compute path (relaxed tolerance for bf16 quantization).
    x2 = jax.random.normal(k2, (200, input_dim), jnp.float32)
    o2 = jax.block_until_ready(rain_prediction_forward(x2, params, block_rows=64))
    r2 = reference_forward(x2, params)
    assert o2.shape == (200, 1), o2.shape
    assert jnp.allclose(o2, r2, atol=3e-2, rtol=3e-2), (o2, r2)

    # 3) auto tiling: >=2-tile split heuristic + (8,128)-aligned output store path.
    x3 = jax.random.normal(k3, (2048, input_dim), jnp.float32)
    o3 = jax.block_until_ready(rain_prediction_forward(x3, params))
    r3 = reference_forward(x3, params)
    assert o3.shape == (2048, 1), o3.shape
    assert jnp.allclose(o3, r3, atol=3e-2, rtol=3e-2), (o3, r3)

    print("KERNEL_OK")
</pallas_src>

<mosaic_0001>
module attributes {stable_mosaic.version = 11 : i64} {
  func.func @mlp_kernel(%arg0: i32, %arg1: memref<8x6xf32, #tpu.memory_space<vmem>>, %arg2: memref<6x128xf32, #tpu.memory_space<vmem>>, %arg3: memref<1x128xf32, #tpu.memory_space<vmem>>, %arg4: memref<128x128xf32, #tpu.memory_space<vmem>>, %arg5: memref<1x128xf32, #tpu.memory_space<vmem>>, %arg6: memref<1x128xf32, #tpu.memory_space<vmem>>, %arg7: memref<1xf32, #tpu.memory_space<smem>>, %arg8: memref<1x8xf32, #tpu.memory_space<vmem>>) attributes {dimension_semantics = [#tpu.dimension_semantics<parallel>], iteration_bounds = array<i64: 1>, scalar_prefetch = 0 : i64, scratch_operands = 0 : i64, tpu.core_type = #tpu.core_type<tc>, window_params = [{transform_indices = @transform_0, window_bounds = array<i64: 8, 6>}, {pipeline_mode = #tpu.pipeline_mode<synchronous>, transform_indices = @transform_1, window_bounds = array<i64: 6, 128>}, {pipeline_mode = #tpu.pipeline_mode<synchronous>, transform_indices = @transform_2, window_bounds = array<i64: 1, 128>}, {pipeline_mode = #tpu.pipeline_mode<synchronous>, transform_indices = @transform_3, window_bounds = array<i64: 128, 128>}, {pipeline_mode = #tpu.pipeline_mode<synchronous>, transform_indices = @transform_4, window_bounds = array<i64: 1, 128>}, {pipeline_mode = #tpu.pipeline_mode<synchronous>, transform_indices = @transform_5, window_bounds = array<i64: 1, 128>}, {transform_indices = @transform_6, window_bounds = array<i64: 1>}, {transform_indices = @transform_7, window_bounds = array<i64: 1, 8>}]} {
    %c0 = arith.constant 0 : index
    %c0_0 = arith.constant 0 : index
    %0 = vector.load %arg1[%c0, %c0_0] : memref<8x6xf32, #tpu.memory_space<vmem>>, vector<8x6xf32>
    %c0_1 = arith.constant 0 : index
    %c0_2 = arith.constant 0 : index
    %1 = vector.load %arg2[%c0_1, %c0_2] : memref<6x128xf32, #tpu.memory_space<vmem>>, vector<6x128xf32>
    %cst = arith.constant dense<0.000000e+00> : vector<8x128xf32>
    %2 = tpu.matmul %0, %1, %cst {dimension_numbers = #tpu.dot_dimension_numbers<[1], [0], [0], [1], [0, 0, 1, 1], [], []>} : vector<8x6xf32>, vector<6x128xf32>, vector<8x128xf32> -> vector<8x128xf32>
    %c0_3 = arith.constant 0 : index
    %c0_4 = arith.constant 0 : index
    %3 = vector.load %arg3[%c0_3, %c0_4] : memref<1x128xf32, #tpu.memory_space<vmem>>, vector<1x128xf32>
    %4 = vector.broadcast %3 : vector<1x128xf32> to vector<8x128xf32>
    %5 = arith.addf %2, %4 : vector<8x128xf32>
    %cst_5 = arith.constant 0.000000e+00 : f32
    %6 = vector.broadcast %cst_5 : f32 to vector<8x128xf32>
    %7 = arith.maximumf %5, %6 : vector<8x128xf32>
    %c0_6 = arith.constant 0 : index
    %c0_7 = arith.constant 0 : index
    %8 = vector.load %arg4[%c0_6, %c0_7] : memref<128x128xf32, #tpu.memory_space<vmem>>, vector<128x128xf32>
    %cst_8 = arith.constant dense<0.000000e+00> : vector<8x128xf32>
    %9 = tpu.matmul %7, %8, %cst_8 {dimension_numbers = #tpu.dot_dimension_numbers<[1], [0], [0], [1], [0, 0, 1, 1], [], []>} : vector<8x128xf32>, vector<128x128xf32>, vector<8x128xf32> -> vector<8x128xf32>
    %c0_9 = arith.constant 0 : index
    %c0_10 = arith.constant 0 : index
    %10 = vector.load %arg5[%c0_9, %c0_10] : memref<1x128xf32, #tpu.memory_space<vmem>>, vector<1x128xf32>
    %11 = vector.broadcast %10 : vector<1x128xf32> to vector<8x128xf32>
    %12 = arith.addf %9, %11 : vector<8x128xf32>
    %cst_11 = arith.constant 0.000000e+00 : f32
    %13 = vector.broadcast %cst_11 : f32 to vector<8x128xf32>
    %14 = arith.maximumf %12, %13 : vector<8x128xf32>
    %c0_12 = arith.constant 0 : index
    %c0_13 = arith.constant 0 : index
    %15 = vector.load %arg6[%c0_12, %c0_13] : memref<1x128xf32, #tpu.memory_space<vmem>>, vector<1x128xf32>
    %16 = vector.broadcast %15 : vector<1x128xf32> to vector<8x128xf32>
    %17 = arith.mulf %14, %16 : vector<8x128xf32>
    %cst_14 = arith.constant dense<0.000000e+00> : vector<8xf32>
    %18 = vector.multi_reduction <add>, %17, %cst_14 [1] : vector<8x128xf32> to vector<8xf32>
    %c0_15 = arith.constant 0 : index
    %19 = memref.load %arg7[%c0_15] : memref<1xf32, #tpu.memory_space<smem>>
    %20 = vector.broadcast %19 : f32 to vector<8xf32>
    %21 = arith.addf %18, %20 : vector<8xf32>
    %22 = vector.shape_cast %21 : vector<8xf32> to vector<1x8xf32>
    %c0_16 = arith.constant 0 : index
    %c0_17 = arith.constant 0 : index
    %23 = vector.load %arg8[%c0_16, %c0_17] : memref<1x8xf32, #tpu.memory_space<vmem>>, vector<1x8xf32>
    tpu.vector_store %arg8[%c0_16, %c0_17], %22 {strides = array<i32>} : memref<1x8xf32, #tpu.memory_space<vmem>>, vector<1x8xf32>,
    return
  }
  func.func @transform_0(%arg0: i32) -> (i32, i32) {
    %c0_i32 = arith.constant 0 : i32
    %c0_i32_0 = arith.constant 0 : i32
    return %arg0, %c0_i32 : i32, i32
  }
  func.func @transform_1(%arg0: i32) -> (i32, i32) {
    %c0_i32 = arith.constant 0 : i32
    %c0_i32_0 = arith.constant 0 : i32
    %c0_i32_1 = arith.constant 0 : i32
    return %c0_i32, %c0_i32_0 : i32, i32
  }
  func.func @transform_2(%arg0: i32) -> (i32, i32) {
    %c0_i32 = arith.constant 0 : i32
    %c0_i32_0 = arith.constant 0 : i32
    %c0_i32_1 = arith.constant 0 : i32
    return %c0_i32, %c0_i32_0 : i32, i32
  }
  func.func @transform_3(%arg0: i32) -> (i32, i32) {
    %c0_i32 = arith.constant 0 : i32
    %c0_i32_0 = arith.constant 0 : i32
    %c0_i32_1 = arith.constant 0 : i32
    return %c0_i32, %c0_i32_0 : i32, i32
  }
  func.func @transform_4(%arg0: i32) -> (i32, i32) {
    %c0_i32 = arith.constant 0 : i32
    %c0_i32_0 = arith.constant 0 : i32
    %c0_i32_1 = arith.constant 0 : i32
    return %c0_i32, %c0_i32_0 : i32, i32
  }
  func.func @transform_5(%arg0: i32) -> (i32, i32) {
    %c0_i32 = arith.constant 0 : i32
    %c0_i32_0 = arith.constant 0 : i32
    %c0_i32_1 = arith.constant 0 : i32
    return %c0_i32, %c0_i32_0 : i32, i32
  }
  func.func @transform_6(%arg0: i32) -> i32 {
    %c0_i32 = arith.constant 0 : i32
    %c0_i32_0 = arith.constant 0 : i32
    return %c0_i32 : i32
  }
  func.func @transform_7(%arg0: i32) -> (i32, i32) {
    %c0_i32 = arith.constant 0 : i32
    %c0_i32_0 = arith.constant 0 : i32
    return %arg0, %c0_i32 : i32, i32
  }
}

module attributes {stable_mosaic.version = 11 : i64} {
  func.func @mlp_kernel(%arg0: i32, %arg1: memref<8x6xf32, #tpu.memory_space<vmem>>, %arg2: memref<6x128xf32, #tpu.memory_space<vmem>>, %arg3: memref<1x128xf32, #tpu.memory_space<vmem>>, %arg4: memref<128x128xf32, #tpu.memory_space<vmem>>, %arg5: memref<1x128xf32, #tpu.memory_space<vmem>>, %arg6: memref<1x128xf32, #tpu.memory_space<vmem>>, %arg7: memref<1xf32, #tpu.memory_space<smem>>, %arg8: memref<1x8xf32, #tpu.memory_space<vmem>>) attributes {dimension_semantics = [#tpu.dimension_semantics<parallel>], iteration_bounds = array<i64: 1>, scalar_prefetch = 0 : i64, scratch_operands = 0 : i64, tpu.core_type = #tpu.core_type<tc>, window_params = [{transform_indices = @transform_0, window_bounds = array<i64: 8, 6>}, {pipeline_mode = #tpu.pipeline_mode<synchronous>, transform_indices = @transform_1, window_bounds = array<i64: 6, 128>}, {pipeline_mode = #tpu.pipeline_mode<synchronous>, transform_indices = @transform_2, window_bounds = array<i64: 1, 128>}, {pipeline_mode = #tpu.pipeline_mode<synchronous>, transform_indices = @transform_3, window_bounds = array<i64: 128, 128>}, {pipeline_mode = #tpu.pipeline_mode<synchronous>, transform_indices = @transform_4, window_bounds = array<i64: 1, 128>}, {pipeline_mode = #tpu.pipeline_mode<synchronous>, transform_indices = @transform_5, window_bounds = array<i64: 1, 128>}, {transform_indices = @transform_6, window_bounds = array<i64: 1>}, {transform_indices = @transform_7, window_bounds = array<i64: 1, 8>}]} {
    %c0 = arith.constant 0 : index
    %c0_0 = arith.constant 0 : index
    %0 = vector.load %arg1[%c0, %c0_0] : memref<8x6xf32, #tpu.memory_space<vmem>>, vector<8x6xf32>
    %c0_1 = arith.constant 0 : index
    %c0_2 = arith.constant 0 : index
    %1 = vector.load %arg2[%c0_1, %c0_2] : memref<6x128xf32, #tpu.memory_space<vmem>>, vector<6x128xf32>
    %cst = arith.constant dense<0.000000e+00> : vector<8x128xf32>
    %2 = tpu.matmul %0, %1, %cst {dimension_numbers = #tpu.dot_dimension_numbers<[1], [0], [0], [1], [0, 0, 1, 1], [], []>} : vector<8x6xf32>, vector<6x128xf32>, vector<8x128xf32> -> vector<8x128xf32>
    %c0_3 = arith.constant 0 : index
    %c0_4 = arith.constant 0 : index
    %3 = vector.load %arg3[%c0_3, %c0_4] : memref<1x128xf32, #tpu.memory_space<vmem>>, vector<1x128xf32>
    %4 = vector.broadcast %3 : vector<1x128xf32> to vector<8x128xf32>
    %5 = arith.addf %2, %4 : vector<8x128xf32>
    %cst_5 = arith.constant 0.000000e+00 : f32
    %6 = vector.broadcast %cst_5 : f32 to vector<8x128xf32>
    %7 = arith.maximumf %5, %6 : vector<8x128xf32>
    %c0_6 = arith.constant 0 : index
    %c0_7 = arith.constant 0 : index
    %8 = vector.load %arg4[%c0_6, %c0_7] : memref<128x128xf32, #tpu.memory_space<vmem>>, vector<128x128xf32>
    %cst_8 = arith.constant dense<0.000000e+00> : vector<8x128xf32>
    %9 = tpu.matmul %7, %8, %cst_8 {dimension_numbers = #tpu.dot_dimension_numbers<[1], [0], [0], [1], [0, 0, 1, 1], [], []>} : vector<8x128xf32>, vector<128x128xf32>, vector<8x128xf32> -> vector<8x128xf32>
    %c0_9 = arith.constant 0 : index
    %c0_10 = arith.constant 0 : index
    %10 = vector.load %arg5[%c0_9, %c0_10] : memref<1x128xf32, #tpu.memory_space<vmem>>, vector<1x128xf32>
    %11 = vector.broadcast %10 : vector<1x128xf32> to vector<8x128xf32>
    %12 = arith.addf %9, %11 : vector<8x128xf32>
    %cst_11 = arith.constant 0.000000e+00 : f32
    %13 = vector.broadcast %cst_11 : f32 to vector<8x128xf32>
    %14 = arith.maximumf %12, %13 : vector<8x128xf32>
    %c0_12 = arith.constant 0 : index
    %c0_13 = arith.constant 0 : index
    %15 = vector.load %arg6[%c0_12, %c0_13] : memref<1x128xf32, #tpu.memory_space<vmem>>, vector<1x128xf32>
    %16 = vector.broadcast %15 : vector<1x128xf32> to vector<8x128xf32>
    %17 = arith.mulf %14, %16 : vector<8x128xf32>
    %cst_14 = arith.constant dense<0.000000e+00> : vector<8xf32>
    %18 = vector.multi_reduction <add>, %17, %cst_14 [1] : vector<8x128xf32> to vector<8xf32>
    %c0_15 = arith.constant 0 : index
    %19 = memref.load %arg7[%c0_15] : memref<1xf32, #tpu.memory_space<smem>>
    %20 = vector.broadcast %19 : f32 to vector<8xf32>
    %21 = arith.addf %18, %20 : vector<8xf32>
    %22 = vector.shape_cast %21 : vector<8xf32> to vector<1x8xf32>
    %c0_16 = arith.constant 0 : index
    %c0_17 = arith.constant 0 : index
    %23 = vector.load %arg8[%c0_16, %c0_17] : memref<1x8xf32, #tpu.memory_space<vmem>>, vector<1x8xf32>
    tpu.vector_store %arg8[%c0_16, %c0_17], %22 {strides = array<i32>} : memref<1x8xf32, #tpu.memory_space<vmem>>, vector<1x8xf32>,
    return
  }
  func.func @transform_0(%arg0: i32) -> (i32, i32) {
    %c0_i32 = arith.constant 0 : i32
    %c0_i32_0 = arith.constant 0 : i32
    return %arg0, %c0_i32 : i32, i32
  }
  func.func @transform_1(%arg0: i32) -> (i32, i32) {
    %c0_i32 = arith.constant 0 : i32
    %c0_i32_0 = arith.constant 0 : i32
    %c0_i32_1 = arith.constant 0 : i32
    return %c0_i32, %c0_i32_0 : i32, i32
  }
  func.func @transform_2(%arg0: i32) -> (i32, i32) {
    %c0_i32 = arith.constant 0 : i32
    %c0_i32_0 = arith.constant 0 : i32
    %c0_i32_1 = arith.constant 0 : i32
    return %c0_i32, %c0_i32_0 : i32, i32
  }
  func.func @transform_3(%arg0: i32) -> (i32, i32) {
    %c0_i32 = arith.constant 0 : i32
    %c0_i32_0 = arith.constant 0 : i32
    %c0_i32_1 = arith.constant 0 : i32
    return %c0_i32, %c0_i32_0 : i32, i32
  }
  func.func @transform_4(%arg0: i32) -> (i32, i32) {
    %c0_i32 = arith.constant 0 : i32
    %c0_i32_0 = arith.constant 0 : i32
    %c0_i32_1 = arith.constant 0 : i32
    return %c0_i32, %c0_i32_0 : i32, i32
  }
  func.func @transform_5(%arg0: i32) -> (i32, i32) {
    %c0_i32 = arith.constant 0 : i32
    %c0_i32_0 = arith.constant 0 : i32
    %c0_i32_1 = arith.constant 0 : i32
    return %c0_i32, %c0_i32_0 : i32, i32
  }
  func.func @transform_6(%arg0: i32) -> i32 {
    %c0_i32 = arith.constant 0 : i32
    %c0_i32_0 = arith.constant 0 : i32
    return %c0_i32 : i32
  }
  func.func @transform_7(%arg0: i32) -> (i32, i32) {
    %c0_i32 = arith.constant 0 : i32
    %c0_i32_0 = arith.constant 0 : i32
    return %arg0, %c0_i32 : i32, i32
  }
}

module attributes {stable_mosaic.version = 11 : i64} {
  func.func @mlp_kernel(%arg0: i32, %arg1: memref<8x6xf32, #tpu.memory_space<vmem>>, %arg2: memref<6x128xf32, #tpu.memory_space<vmem>>, %arg3: memref<1x128xf32, #tpu.memory_space<vmem>>, %arg4: memref<128x128xf32, #tpu.memory_space<vmem>>, %arg5: memref<1x128xf32, #tpu.memory_space<vmem>>, %arg6: memref<1x128xf32, #tpu.memory_space<vmem>>, %arg7: memref<1xf32, #tpu.memory_space<smem>>, %arg8: memref<1x8xf32, #tpu.memory_space<vmem>>) attributes {dimension_semantics = [#tpu.dimension_semantics<parallel>], iteration_bounds = array<i64: 1>, scalar_prefetch = 0 : i64, scratch_operands = 0 : i64, tpu.core_type = #tpu.core_type<tc>, window_params = [{transform_indices = @transform_0, window_bounds = array<i64: 8, 6>}, {pipeline_mode = #tpu.pipeline_mode<synchronous>, transform_indices = @transform_1, window_bounds = array<i64: 6, 128>}, {pipeline_mode = #tpu.pipeline_mode<synchronous>, transform_indices = @transform_2, window_bounds = array<i64: 1, 128>}, {pipeline_mode = #tpu.pipeline_mode<synchronous>, transform_indices = @transform_3, window_bounds = array<i64: 128, 128>}, {pipeline_mode = #tpu.pipeline_mode<synchronous>, transform_indices = @transform_4, window_bounds = array<i64: 1, 128>}, {pipeline_mode = #tpu.pipeline_mode<synchronous>, transform_indices = @transform_5, window_bounds = array<i64: 1, 128>}, {transform_indices = @transform_6, window_bounds = array<i64: 1>}, {transform_indices = @transform_7, window_bounds = array<i64: 1, 8>}]} {
    %c0 = arith.constant 0 : index
    %c0_0 = arith.constant 0 : index
    %0 = vector.load %arg1[%c0, %c0_0] : memref<8x6xf32, #tpu.memory_space<vmem>>, vector<8x6xf32>
    %c0_1 = arith.constant 0 : index
    %c0_2 = arith.constant 0 : index
    %1 = vector.load %arg2[%c0_1, %c0_2] : memref<6x128xf32, #tpu.memory_space<vmem>>, vector<6x128xf32>
    %cst = arith.constant dense<0.000000e+00> : vector<8x128xf32>
    %2 = tpu.matmul %0, %1, %cst {dimension_numbers = #tpu.dot_dimension_numbers<[1], [0], [0], [1], [0, 0, 1, 1], [], []>} : vector<8x6xf32>, vector<6x128xf32>, vector<8x128xf32> -> vector<8x128xf32>
    %c0_3 = arith.constant 0 : index
    %c0_4 = arith.constant 0 : index
    %3 = vector.load %arg3[%c0_3, %c0_4] : memref<1x128xf32, #tpu.memory_space<vmem>>, vector<1x128xf32>
    %4 = vector.broadcast %3 : vector<1x128xf32> to vector<8x128xf32>
    %5 = arith.addf %2, %4 : vector<8x128xf32>
    %cst_5 = arith.constant 0.000000e+00 : f32
    %6 = vector.broadcast %cst_5 : f32 to vector<8x128xf32>
    %7 = arith.maximumf %5, %6 : vector<8x128xf32>
    %c0_6 = arith.constant 0 : index
    %c0_7 = arith.constant 0 : index
    %8 = vector.load %arg4[%c0_6, %c0_7] : memref<128x128xf32, #tpu.memory_space<vmem>>, vector<128x128xf32>
    %cst_8 = arith.constant dense<0.000000e+00> : vector<8x128xf32>
    %9 = tpu.matmul %7, %8, %cst_8 {dimension_numbers = #tpu.dot_dimension_numbers<[1], [0], [0], [1], [0, 0, 1, 1], [], []>} : vector<8x128xf32>, vector<128x128xf32>, vector<8x128xf32> -> vector<8x128xf32>
    %c0_9 = arith.constant 0 : index
    %c0_10 = arith.constant 0 : index
    %10 = vector.load %arg5[%c0_9, %c0_10] : memref<1x128xf32, #tpu.memory_space<vmem>>, vector<1x128xf32>
    %11 = vector.broadcast %10 : vector<1x128xf32> to vector<8x128xf32>
    %12 = arith.addf %9, %11 : vector<8x128xf32>
    %cst_11 = arith.constant 0.000000e+00 : f32
    %13 = vector.broadcast %cst_11 : f32 to vector<8x128xf32>
    %14 = arith.maximumf %12, %13 : vector<8x128xf32>
    %c0_12 = arith.constant 0 : index
    %c0_13 = arith.constant 0 : index
    %15 = vector.load %arg6[%c0_12, %c0_13] : memref<1x128xf32, #tpu.memory_space<vmem>>, vector<1x128xf32>
    %16 = vector.broadcast %15 : vector<1x128xf32> to vector<8x128xf32>
    %17 = arith.mulf %14, %16 : vector<8x128xf32>
    %cst_14 = arith.constant dense<0.000000e+00> : vector<8xf32>
    %18 = vector.multi_reduction <add>, %17, %cst_14 [1] : vector<8x128xf32> to vector<8xf32>
    %c0_15 = arith.constant 0 : index
    %19 = memref.load %arg7[%c0_15] : memref<1xf32, #tpu.memory_space<smem>>
    %20 = vector.broadcast %19 : f32 to vector<8xf32>
    %21 = arith.addf %18, %20 : vector<8xf32>
    %22 = vector.shape_cast %21 : vector<8xf32> to vector<1x8xf32>
    %c0_16 = arith.constant 0 : index
    %c0_17 = arith.constant 0 : index
    %23 = vector.load %arg8[%c0_16, %c0_17] : memref<1x8xf32, #tpu.memory_space<vmem>>, vector<1x8xf32>
    tpu.vector_store %arg8[%c0_16, %c0_17], %22 {strides = array<i32>} : memref<1x8xf32, #tpu.memory_space<vmem>>, vector<1x8xf32>,
    return
  }
  func.func @transform_0(%arg0: i32) -> (i32, i32) {
    %c0_i32 = arith.constant 0 : i32
    %c0_i32_0 = arith.constant 0 : i32
    return %arg0, %c0_i32 : i32, i32
  }
  func.func @transform_1(%arg0: i32) -> (i32, i32) {
    %c0_i32 = arith.constant 0 : i32
    %c0_i32_0 = arith.constant 0 : i32
    %c0_i32_1 = arith.constant 0 : i32
    return %c0_i32, %c0_i32_0 : i32, i32
  }
  func.func @transform_2(%arg0: i32) -> (i32, i32) {
    %c0_i32 = arith.constant 0 : i32
    %c0_i32_0 = arith.constant 0 : i32
    %c0_i32_1 = arith.constant 0 : i32
    return %c0_i32, %c0_i32_0 : i32, i32
  }
  func.func @transform_3(%arg0: i32) -> (i32, i32) {
    %c0_i32 = arith.constant 0 : i32
    %c0_i32_0 = arith.constant 0 : i32
    %c0_i32_1 = arith.constant 0 : i32
    return %c0_i32, %c0_i32_0 : i32, i32
  }
  func.func @transform_4(%arg0: i32) -> (i32, i32) {
    %c0_i32 = arith.constant 0 : i32
    %c0_i32_0 = arith.constant 0 : i32
    %c0_i32_1 = arith.constant 0 : i32
    return %c0_i32, %c0_i32_0 : i32, i32
  }
  func.func @transform_5(%arg0: i32) -> (i32, i32) {
    %c0_i32 = arith.constant 0 : i32
    %c0_i32_0 = arith.constant 0 : i32
    %c0_i32_1 = arith.constant 0 : i32
    return %c0_i32, %c0_i32_0 : i32, i32
  }
  func.func @transform_6(%arg0: i32) -> i32 {
    %c0_i32 = arith.constant 0 : i32
    %c0_i32_0 = arith.constant 0 : i32
    return %c0_i32 : i32
  }
  func.func @transform_7(%arg0: i32) -> (i32, i32) {
    %c0_i32 = arith.constant 0 : i32
    %c0_i32_0 = arith.constant 0 : i32
    return %arg0, %c0_i32 : i32, i32
  }
}

</mosaic_0001>

<llo_original>
// kernel: tpu_custom_call.1
$region0: #{tpu_custom_call.1}
  #allocation0 [shape = 'u32[]', space=smem, size = 0x4, offset = 0x4, fixed_abs, tag = 'smem constant byte address 0x4 - core index']
  #allocation1 [shape = 'u32[144,128]{1,0:T(1,128)}', space=vmem, size = 0x12000, scoped, tag = 'internal scratch']
  #allocation2 [shape = 'f32[1]{0:T(128)S(6)}', space=smem, size = 0x200, scoped, tag = 'scoped memory for tpu_custom_call.1']
  %s0 = inlined_call_operand.hbm [shape: f32[8,6], index: 0, kind: input, shape index: {}]
  %s1 = inlined_call_operand.hbm [shape: f32[6,128], index: 1, kind: input, shape index: {}]
  %s2 = inlined_call_operand.vmem [shape: f32[1,128], index: 2, kind: input, shape index: {}]
  %s3 = inlined_call_operand.hbm [shape: f32[128,128], index: 3, kind: input, shape index: {}]
  %s4 = inlined_call_operand.vmem [shape: f32[1,128], index: 4, kind: input, shape index: {}]
  %s5 = inlined_call_operand.vmem [shape: f32[1,128], index: 5, kind: input, shape index: {}]
  %s6 = inlined_call_operand.<no memory space> [shape: f32[1], index: 6, kind: input, shape index: {}]
  %s7 = inlined_call_operand.hbm [shape: f32[1,8], index: 7, kind: output, shape index: {}]
  %s8 = sld [smem:[#allocation0]]
  $region50: #{tpu_custom_call.1} parent=0
    _
  %s10 = ssub.s32 1, %s8
  %s11 = scalar_select 0, %s10, %s8
  %12 = sst [smem:[#allocation2]] %s6
  $region1: #{tpu_custom_call.1} parent=0
    #allocation3 [shape = 'u8[4096]{0}', space=vmem, size = 0x1000, scoped, tag = 'input window, operand 0, single buffered']
    #allocation4 [shape = 's32[1]{0}', space=sflag, size = 0x4, scoped, tag = 'scoped memory for tpu_custom_call.1']
    #allocation5 [shape = 's32[1]{0}', space=sflag, size = 0x4, scoped, tag = 'scoped memory for tpu_custom_call.1']
    #allocation6 [shape = 'u8[4096]{0}', space=vmem, size = 0x1000, scoped, tag = 'input window, operand 1, single buffered']
    #allocation7 [shape = 's32[1]{0}', space=sflag, size = 0x4, scoped, tag = 'scoped memory for tpu_custom_call.1']
    #allocation8 [shape = 'u8[65536]{0}', space=vmem, size = 0x10000, scoped, tag = 'input window, operand 3, single buffered']
    #allocation9 [shape = 'u8[512]{0}', space=vmem, size = 0x400, scoped, tag = 'output window, operand 0, single buffered']
    %13 = vsyncpa [#allocation4], 0
    %14 = vsyncpa [#allocation7], 0
    %15 = vsyncpa [#allocation5], 0
    // Predicated region
    $region2: #{tpu_custom_call.1} parent=1 // pred_check
      _
    $region3: #{tpu_custom_call.1} parent=1 // pred_check_branch
      %17 = sbr.rel (0) target = $region5
    $region4: #{tpu_custom_call.1} parent=1 // pred_region
      %s19 = ssub.s32 128, 128
      %20 = vsyncadd [#allocation4], %s19
      %s22 = sshll.u32 [#allocation3], 4
      %s23 = int_to_ptr.vmem [resolvable:$true] %s22
      %25 = dma.hbm_to_vmem [thread:$0]  %s0, 128, %s23, [#allocation4]
    $region5: #{tpu_custom_call.1} parent=1 // pred_fallthru
      _
    // Predicated region
    $region6: #{tpu_custom_call.1} parent=1 // pred_check
      _
    $region7: #{tpu_custom_call.1} parent=1 // pred_check_branch
      %27 = sbr.rel (0) target = $region9
    $region8: #{tpu_custom_call.1} parent=1 // pred_region
      %s29 = ssub.s32 128, 128
      %30 = vsyncadd [#allocation7], %s29
      %s32 = sshll.u32 [#allocation6], 4
      %s33 = int_to_ptr.vmem [resolvable:$true] %s32
      %35 = dma.hbm_to_vmem [thread:$0]  %s1, 128, %s33, [#allocation7]
    $region9: #{tpu_custom_call.1} parent=1 // pred_fallthru
      _
    // Predicated region
    $region10: #{tpu_custom_call.1} parent=1 // pred_check
      _
    $region11: #{tpu_custom_call.1} parent=1 // pred_check_branch
      %37 = sbr.rel (0) target = $region13
    $region12: #{tpu_custom_call.1} parent=1 // pred_region
      _
    $region13: #{tpu_custom_call.1} parent=1 // pred_fallthru
      _
    // Predicated region
    $region14: #{tpu_custom_call.1} parent=1 // pred_check
      _
    $region15: #{tpu_custom_call.1} parent=1 // pred_check_branch
      %39 = sbr.rel (0) target = $region17
    $region16: #{tpu_custom_call.1} parent=1 // pred_region
      %s41 = ssub.s32 2048, 2048
      %42 = vsyncadd [#allocation7], %s41
      %s43 = sshll.u32 [#allocation8], 4
      %s44 = int_to_ptr.vmem [resolvable:$true] %s43
      %49 = dma.hbm_to_vmem [thread:$0]  %s3, 2048, %s44, [#allocation7], 128, 128, 8
    $region17: #{tpu_custom_call.1} parent=1 // pred_fallthru
      _
    // Predicated region
    $region18: #{tpu_custom_call.1} parent=1 // pred_check
      _
    $region19: #{tpu_custom_call.1} parent=1 // pred_check_branch
      %51 = sbr.rel (0) target = $region21
    $region20: #{tpu_custom_call.1} parent=1 // pred_region
      _
    $region21: #{tpu_custom_call.1} parent=1 // pred_fallthru
      _
    // Predicated region
    $region22: #{tpu_custom_call.1} parent=1 // pred_check
      _
    $region23: #{tpu_custom_call.1} parent=1 // pred_check_branch
      %53 = sbr.rel (0) target = $region25
    $region24: #{tpu_custom_call.1} parent=1 // pred_region
      _
    $region25: #{tpu_custom_call.1} parent=1 // pred_fallthru
      _
    // Predicated region
    $region26: #{tpu_custom_call.1} parent=1 // pred_check
      _
    $region27: #{tpu_custom_call.1} parent=1 // pred_check_branch
      %55 = sbr.rel (0) target = $region29
    $region28: #{tpu_custom_call.1} parent=1 // pred_region
      _
    $region29: #{tpu_custom_call.1} parent=1 // pred_fallthru
      _
    // Predicated region
    $region30: #{tpu_custom_call.1} parent=1 // pred_check
      _
    $region31: #{tpu_custom_call.1} parent=1 // pred_check_branch
      %57 = sbr.rel (0) target = $region33
    $region32: #{tpu_custom_call.1} parent=1 // pred_region
      %58 = dma.done [#allocation4], 128
    $region33: #{tpu_custom_call.1} parent=1 // pred_fallthru
      _
    // Predicated region
    $region34: #{tpu_custom_call.1} parent=1 // pred_check
      _
    $region35: #{tpu_custom_call.1} parent=1 // pred_check_branch
      %60 = sbr.rel (0) target = $region37
    $region36: #{tpu_custom_call.1} parent=1 // pred_region
      %61 = dma.done [#allocation7], 128
    $region37: #{tpu_custom_call.1} parent=1 // pred_fallthru
      _
    // Predicated region
    $region38: #{tpu_custom_call.1} parent=1 // pred_check
      _
    $region39: #{tpu_custom_call.1} parent=1 // pred_check_branch
      %63 = sbr.rel (0) target = $region41
    $region40: #{tpu_custom_call.1} parent=1 // pred_region
      %64 = dma.done [#allocation7], 2048
    $region41: #{tpu_custom_call.1} parent=1 // pred_fallthru
      _
    %v65 = vld [vmem:[#allocation3] sm:$0xff]
    %v66 = vld [vmem:[#allocation6] sm:$0x3f]
    %v67 = vld [vmem:[%s2] sm:$0x1]
    %v69 = vlaneseq
    %v70 = vshrl.u32 %v69, 7
    %v71 = vsub.s32 0, %v70
    %v72 = vrot.slane %v67, %v71
    %vm74 = vcmask 48128
    %v76 = vsel %vm74, %v65, 0
    %vm78 = vcmask 1045504
    %v80 = vsel %vm78, %v66, 0
    %82 = vmatprep.subr.mxu0 0.0
    %83 = vmatpush1.msra.mxu0 %v80
    %84 = vmatprep.subr.mxu0 0.0
    %85 = vmatpush1.msra.mxu0 0.0
    %86 = vmatprep.subr.mxu0 0.0
    %87 = vmatpush1.msra.mxu0 0.0
    %88 = vmatprep.subr.mxu0 0.0
    %89 = vmatpush1.msra.mxu0 0.0
    %90 = vmatprep.subr.mxu0 0.0
    %91 = vmatpush1.msra.mxu0 0.0
    %92 = vmatprep.subr.mxu0 0.0
    %93 = vmatpush1.msra.mxu0 0.0
    %94 = vmatprep.subr.mxu0 0.0
    %95 = vmatpush1.msra.mxu0 0.0
    %96 = vmatprep.subr.mxu0 0.0
    %97 = vmatpush1.msra.mxu0 0.0
    %98 = vmatprep.subr.mxu0 0.0
    %99 = vmatpush1.msra.mxu0 0.0
    %100 = vmatprep.subr.mxu0 0.0
    %101 = vmatpush1.msra.mxu0 0.0
    %102 = vmatprep.subr.mxu0 0.0
    %103 = vmatpush1.msra.mxu0 0.0
    %104 = vmatprep.subr.mxu0 0.0
    %105 = vmatpush1.msra.mxu0 0.0
    %106 = vmatprep.subr.mxu0 0.0
    %107 = vmatpush1.msra.mxu0 0.0
    %108 = vmatprep.subr.mxu0 0.0
    %109 = vmatpush1.msra.mxu0 0.0
    %110 = vmatprep.subr.mxu0 0.0
    %111 = vmatpush1.msra.mxu0 0.0
    %112 = vmatprep.subr.mxu0 0.0
    %113 = vmatpush1.msra.mxu0 0.0
    %114 = vmatprep.subr.mxu0 0.0
    %115 = vmatpush1.msra.mxu0 0.0
    %116 = vmatprep.subr.mxu0 0.0
    %117 = vmatpush1.msra.mxu0 0.0
    %118 = vmatprep.subr.mxu0 0.0
    %119 = vmatpush1.msra.mxu0 0.0
    %120 = vmatprep.subr.mxu0 0.0
    %121 = vmatpush1.msra.mxu0 0.0
    %122 = vmatprep.subr.mxu0 0.0
    %123 = vmatpush1.msra.mxu0 0.0
    %124 = vmatprep.subr.mxu0 0.0
    %125 = vmatpush1.msra.mxu0 0.0
    %126 = vmatprep.subr.mxu0 0.0
    %127 = vmatpush1.msra.mxu0 0.0
    %128 = vmatprep.subr.mxu0 0.0
    %129 = vmatpush1.msra.mxu0 0.0
    %130 = vmatprep.subr.mxu0 0.0
    %131 = vmatpush1.msra.mxu0 0.0
    %132 = vmatprep.subr.mxu0 0.0
    %133 = vmatpush1.msra.mxu0 0.0
    %134 = vmatprep.subr.mxu0 0.0
    %135 = vmatpush1.msra.mxu0 0.0
    %136 = vmatprep.subr.mxu0 0.0
    %137 = vmatpush1.msra.mxu0 0.0
    %138 = vmatprep.subr.mxu0 0.0
    %139 = vmatpush1.msra.mxu0 0.0
    %140 = vmatprep.subr.mxu0 0.0
    %141 = vmatpush1.msra.mxu0 0.0
    %142 = vmatprep.subr.mxu0 0.0
    %143 = vmatpush1.msra.mxu0 0.0
    %144 = vmatprep.subr.mxu0 0.0
    %145 = vmatpush1.msra.mxu0 0.0
    %146 = vmatprep.mubr.f32.mxu0 0.0
    %147 = vmatmul.mubr.f32.gmra.mrb[0].mxu0 %v76
    %v148 = vpop.f32.mrb[0].mxu0
    %v149 = vadd.f32 %v72, %v148
    %v150 = vpop.f32.mrb[0].mxu0
    %151 = vdwg.mxu0
    %v152 = vmax.f32 %v149, 0.0
    %v153 = vld [vmem:[#allocation8] sm:$0xff]
    %v154 = vld [vmem:[#allocation8 + $0x8] sm:$0xff]
    %v155 = vld [vmem:[#allocation8 + $0x10] sm:$0xff]
    %v156 = vld [vmem:[#allocation8 + $0x18] sm:$0xff]
    %v157 = vld [vmem:[#allocation8 + $0x20] sm:$0xff]
    %v158 = vld [vmem:[#allocation8 + $0x28] sm:$0xff]
    %v159 = vld [vmem:[#allocation8 + $0x30] sm:$0xff]
    %v160 = vld [vmem:[#allocation8 + $0x38] sm:$0xff]
    %v161 = vld [vmem:[#allocation8 + $0x40] sm:$0xff]
    %v162 = vld [vmem:[#allocation8 + $0x48] sm:$0xff]
    %v163 = vld [vmem:[#allocation8 + $0x50] sm:$0xff]
    %v164 = vld [vmem:[#allocation8 + $0x58] sm:$0xff]
    %v165 = vld [vmem:[#allocation8 + $0x60] sm:$0xff]
    %v166 = vld [vmem:[#allocation8 + $0x68] sm:$0xff]
    %v167 = vld [vmem:[#allocation8 + $0x70] sm:$0xff]
    %v168 = vld [vmem:[#allocation8 + $0x78] sm:$0xff]
    %v169 = vld [vmem:[%s4] sm:$0x1]
    %v171 = vlaneseq
    %v172 = vshrl.u32 %v171, 7
    %v173 = vsub.s32 0, %v172
    %v174 = vrot.slane %v169, %v173
    %176 = vmatprep.subr.mxu0 0.0
    %177 = vmatpush1.msra.mxu0 %v153
    %178 = vmatprep.subr.mxu0 0.0
    %179 = vmatpush1.msra.mxu0 %v154
    %180 = vmatprep.subr.mxu0 0.0
    %181 = vmatpush1.msra.mxu0 %v155
    %182 = vmatprep.subr.mxu0 0.0
    %183 = vmatpush1.msra.mxu0 %v156
    %184 = vmatprep.subr.mxu0 0.0
    %185 = vmatpush1.msra.mxu0 %v157
    %186 = vmatprep.subr.mxu0 0.0
    %187 = vmatpush1.msra.mxu0 %v158
    %188 = vmatprep.subr.mxu0 0.0
    %189 = vmatpush1.msra.mxu0 %v159
    %190 = vmatprep.subr.mxu0 0.0
    %191 = vmatpush1.msra.mxu0 %v160
    %192 = vmatprep.subr.mxu0 0.0
    %193 = vmatpush1.msra.mxu0 %v161
    %194 = vmatprep.subr.mxu0 0.0
    %195 = vmatpush1.msra.mxu0 %v162
    %196 = vmatprep.subr.mxu0 0.0
    %197 = vmatpush1.msra.mxu0 %v163
    %198 = vmatprep.subr.mxu0 0.0
    %199 = vmatpush1.msra.mxu0 %v164
    %200 = vmatprep.subr.mxu0 0.0
    %201 = vmatpush1.msra.mxu0 %v165
    %202 = vmatprep.subr.mxu0 0.0
    %203 = vmatpush1.msra.mxu0 %v166
    %204 = vmatprep.subr.mxu0 0.0
    %205 = vmatpush1.msra.mxu0 %v167
    %206 = vmatprep.subr.mxu0 0.0
    %207 = vmatpush1.msra.mxu0 %v168
    %208 = vmatprep.subr.mxu0 0.0
    %209 = vmatpush1.msra.mxu0 0.0
    %210 = vmatprep.subr.mxu0 0.0
    %211 = vmatpush1.msra.mxu0 0.0
    %212 = vmatprep.subr.mxu0 0.0
    %213 = vmatpush1.msra.mxu0 0.0
    %214 = vmatprep.subr.mxu0 0.0
    %215 = vmatpush1.msra.mxu0 0.0
    %216 = vmatprep.subr.mxu0 0.0
    %217 = vmatpush1.msra.mxu0 0.0
    %218 = vmatprep.subr.mxu0 0.0
    %219 = vmatpush1.msra.mxu0 0.0
    %220 = vmatprep.subr.mxu0 0.0
    %221 = vmatpush1.msra.mxu0 0.0
    %222 = vmatprep.subr.mxu0 0.0
    %223 = vmatpush1.msra.mxu0 0.0
    %224 = vmatprep.subr.mxu0 0.0
    %225 = vmatpush1.msra.mxu0 0.0
    %226 = vmatprep.subr.mxu0 0.0
    %227 = vmatpush1.msra.mxu0 0.0
    %228 = vmatprep.subr.mxu0 0.0
    %229 = vmatpush1.msra.mxu0 0.0
    %230 = vmatprep.subr.mxu0 0.0
    %231 = vmatpush1.msra.mxu0 0.0
    %232 = vmatprep.subr.mxu0 0.0
    %233 = vmatpush1.msra.mxu0 0.0
    %234 = vmatprep.subr.mxu0 0.0
    %235 = vmatpush1.msra.mxu0 0.0
    %236 = vmatprep.subr.mxu0 0.0
    %237 = vmatpush1.msra.mxu0 0.0
    %238 = vmatprep.subr.mxu0 0.0
    %239 = vmatpush1.msra.mxu0 0.0
    %240 = vmatprep.mubr.f32.mxu0 0.0
    %241 = vmatmul.mubr.f32.gmra.mrb[0].mxu0 %v152
    %v242 = vpop.f32.mrb[0].mxu0
    %v243 = vadd.f32 %v174, %v242
    %v244 = vpop.f32.mrb[0].mxu0
    %245 = vdwg.mxu0
    %v246 = vmax.f32 %v243, 0.0
    %v247 = vld [vmem:[%s5] sm:$0x1]
    %v249 = vlaneseq
    %v250 = vshrl.u32 %v249, 7
    %v251 = vsub.s32 0, %v250
    %v252 = vrot.slane %v247, %v251
    %v254 = vmul.f32 %v246, %v252
    %255 = vadd.xlane.f32.xlu0 %v254
    %v256 = vpop.xlane.xlu0 %255
    %s257 = sld [smem:[#allocation2]]
    %v258 = vstv %s257
    %v259 = vadd.f32 %v256, %v258
    %v261 = vlaneseq
    %v262 = vand.u32 %v261, 127
    %v263 = vlaneseq
    %v264 = vshrl.u32 %v263, 7
    %v265 = vsub.s32 %v262, %v264
    %v266 = vrot.slane %v259, %v265
    %vm268 = vcmask 57344
    %269 = vst.msk [vmem:[#allocation9] sm:$0x1] %vm268, %v266
    // Predicated region
    $region42: #{tpu_custom_call.1} parent=1 // pred_check
      _
    $region43: #{tpu_custom_call.1} parent=1 // pred_check_branch
      %271 = sbr.rel (0) target = $region45
    $region44: #{tpu_custom_call.1} parent=1 // pred_region
      %s273 = ssub.s32 16, 16
      %274 = vsyncadd [#allocation5], %s273
      %s276 = sshll.u32 [#allocation9], 4
      %s277 = int_to_ptr.vmem [resolvable:$true] %s276
      %279 = dma.vmem_to_hbm [thread:$0]  %s277, 16, %s7, [#allocation5]
    $region45: #{tpu_custom_call.1} parent=1 // pred_fallthru
      _
    // Predicated region
    $region46: #{tpu_custom_call.1} parent=1 // pred_check
      _
    $region47: #{tpu_custom_call.1} parent=1 // pred_check_branch
      %281 = sbr.rel (0) target = $region49
    $region48: #{tpu_custom_call.1} parent=1 // pred_region
      %282 = dma.done [#allocation5], 16
    $region49: #{tpu_custom_call.1} parent=1 // pred_fallthru
      _
    %283 = vsyncpa [#allocation4], 1
    %284 = vsyncpa [#allocation7], 1
    %285 = vsyncpa [#allocation5], 1

// kernel: tpu_custom_call.1
$region0: #{tpu_custom_call.1}
  #allocation0 [shape = 'u32[]', space=smem, size = 0x4, offset = 0x4, fixed_abs, tag = 'smem constant byte address 0x4 - core index']
  #allocation1 [shape = 'u32[144,128]{1,0:T(1,128)}', space=vmem, size = 0x12000, scoped, tag = 'internal scratch']
  #allocation2 [shape = 'f32[1]{0:T(128)S(6)}', space=smem, size = 0x200, scoped, tag = 'scoped memory for tpu_custom_call.1']
  %s0 = inlined_call_operand.hbm [shape: f32[8,6], index: 0, kind: input, shape index: {}]
  %s1 = inlined_call_operand.hbm [shape: f32[6,128], index: 1, kind: input, shape index: {}]
  %s2 = inlined_call_operand.vmem [shape: f32[1,128], index: 2, kind: input, shape index: {}]
  %s3 = inlined_call_operand.hbm [shape: f32[128,128], index: 3, kind: input, shape index: {}]
  %s4 = inlined_call_operand.vmem [shape: f32[1,128], index: 4, kind: input, shape index: {}]
  %s5 = inlined_call_operand.vmem [shape: f32[1,128], index: 5, kind: input, shape index: {}]
  %s6 = inlined_call_operand.<no memory space> [shape: f32[1], index: 6, kind: input, shape index: {}]
  %s7 = inlined_call_operand.hbm [shape: f32[1,8], index: 7, kind: output, shape index: {}]
  %s8 = sld [smem:[#allocation0]]
  $region50: #{tpu_custom_call.1} parent=0
    _
  %s10 = ssub.s32 1, %s8
  %s11 = scalar_select 0, %s10, %s8
  %12 = sst [smem:[#allocation2]] %s6
  $region1: #{tpu_custom_call.1} parent=0
    #allocation3 [shape = 'u8[4096]{0}', space=vmem, size = 0x1000, scoped, tag = 'input window, operand 0, single buffered']
    #allocation4 [shape = 's32[1]{0}', space=sflag, size = 0x4, scoped, tag = 'scoped memory for tpu_custom_call.1']
    #allocation5 [shape = 's32[1]{0}', space=sflag, size = 0x4, scoped, tag = 'scoped memory for tpu_custom_call.1']
    #allocation6 [shape = 'u8[4096]{0}', space=vmem, size = 0x1000, scoped, tag = 'input window, operand 1, single buffered']
    #allocation7 [shape = 's32[1]{0}', space=sflag, size = 0x4, scoped, tag = 'scoped memory for tpu_custom_call.1']
    #allocation8 [shape = 'u8[65536]{0}', space=vmem, size = 0x10000, scoped, tag = 'input window, operand 3, single buffered']
    #allocation9 [shape = 'u8[512]{0}', space=vmem, size = 0x400, scoped, tag = 'output window, operand 0, single buffered']
    %13 = vsyncpa [#allocation4], 0
    %14 = vsyncpa [#allocation7], 0
    %15 = vsyncpa [#allocation5], 0
    // Predicated region
    $region2: #{tpu_custom_call.1} parent=1 // pred_check
      _
    $region3: #{tpu_custom_call.1} parent=1 // pred_check_branch
      %17 = sbr.rel (0) target = $region5
    $region4: #{tpu_custom_call.1} parent=1 // pred_region
      %s19 = ssub.s32 128, 128
      %20 = vsyncadd [#allocation4], %s19
      %s22 = sshll.u32 [#allocation3], 4
      %s23 = int_to_ptr.vmem [resolvable:$true] %s22
      %25 = dma.hbm_to_vmem [thread:$0]  %s0, 128, %s23, [#allocation4]
    $region5: #{tpu_custom_call.1} parent=1 // pred_fallthru
      _
    // Predicated region
    $region6: #{tpu_custom_call.1} parent=1 // pred_check
      _
    $region7: #{tpu_custom_call.1} parent=1 // pred_check_branch
      %27 = sbr.rel (0) target = $region9
    $region8: #{tpu_custom_call.1} parent=1 // pred_region
      %s29 = ssub.s32 128, 128
      %30 = vsyncadd [#allocation7], %s29
      %s32 = sshll.u32 [#allocation6], 4
      %s33 = int_to_ptr.vmem [resolvable:$true] %s32
      %35 = dma.hbm_to_vmem [thread:$0]  %s1, 128, %s33, [#allocation7]
    $region9: #{tpu_custom_call.1} parent=1 // pred_fallthru
      _
    // Predicated region
    $region10: #{tpu_custom_call.1} parent=1 // pred_check
      _
    $region11: #{tpu_custom_call.1} parent=1 // pred_check_branch
      %37 = sbr.rel (0) target = $region13
    $region12: #{tpu_custom_call.1} parent=1 // pred_region
      _
    $region13: #{tpu_custom_call.1} parent=1 // pred_fallthru
      _
    // Predicated region
    $region14: #{tpu_custom_call.1} parent=1 // pred_check
      _
    $region15: #{tpu_custom_call.1} parent=1 // pred_check_branch
      %39 = sbr.rel (0) target = $region17
    $region16: #{tpu_custom_call.1} parent=1 // pred_region
      %s41 = ssub.s32 2048, 2048
      %42 = vsyncadd [#allocation7], %s41
      %s43 = sshll.u32 [#allocation8], 4
      %s44 = int_to_ptr.vmem [resolvable:$true] %s43
      %49 = dma.hbm_to_vmem [thread:$0]  %s3, 2048, %s44, [#allocation7], 128, 128, 8
    $region17: #{tpu_custom_call.1} parent=1 // pred_fallthru
      _
    // Predicated region
    $region18: #{tpu_custom_call.1} parent=1 // pred_check
      _
    $region19: #{tpu_custom_call.1} parent=1 // pred_check_branch
      %51 = sbr.rel (0) target = $region21
    $region20: #{tpu_custom_call.1} parent=1 // pred_region
      _
    $region21: #{tpu_custom_call.1} parent=1 // pred_fallthru
      _
    // Predicated region
    $region22: #{tpu_custom_call.1} parent=1 // pred_check
      _
    $region23: #{tpu_custom_call.1} parent=1 // pred_check_branch
      %53 = sbr.rel (0) target = $region25
    $region24: #{tpu_custom_call.1} parent=1 // pred_region
      _
    $region25: #{tpu_custom_call.1} parent=1 // pred_fallthru
      _
    // Predicated region
    $region26: #{tpu_custom_call.1} parent=1 // pred_check
      _
    $region27: #{tpu_custom_call.1} parent=1 // pred_check_branch
      %55 = sbr.rel (0) target = $region29
    $region28: #{tpu_custom_call.1} parent=1 // pred_region
      _
    $region29: #{tpu_custom_call.1} parent=1 // pred_fallthru
      _
    // Predicated region
    $region30: #{tpu_custom_call.1} parent=1 // pred_check
      _
    $region31: #{tpu_custom_call.1} parent=1 // pred_check_branch
      %57 = sbr.rel (0) target = $region33
    $region32: #{tpu_custom_call.1} parent=1 // pred_region
      %58 = dma.done [#allocation4], 128
    $region33: #{tpu_custom_call.1} parent=1 // pred_fallthru
      _
    // Predicated region
    $region34: #{tpu_custom_call.1} parent=1 // pred_check
      _
    $region35: #{tpu_custom_call.1} parent=1 // pred_check_branch
      %60 = sbr.rel (0) target = $region37
    $region36: #{tpu_custom_call.1} parent=1 // pred_region
      %61 = dma.done [#allocation7], 128
    $region37: #{tpu_custom_call.1} parent=1 // pred_fallthru
      _
    // Predicated region
    $region38: #{tpu_custom_call.1} parent=1 // pred_check
      _
    $region39: #{tpu_custom_call.1} parent=1 // pred_check_branch
      %63 = sbr.rel (0) target = $region41
    $region40: #{tpu_custom_call.1} parent=1 // pred_region
      %64 = dma.done [#allocation7], 2048
    $region41: #{tpu_custom_call.1} parent=1 // pred_fallthru
      _
    %v65 = vld [vmem:[#allocation3] sm:$0xff]
    %v66 = vld [vmem:[#allocation6] sm:$0x3f]
    %v67 = vld [vmem:[%s2] sm:$0x1]
    %v69 = vlaneseq
    %v70 = vshrl.u32 %v69, 7
    %v71 = vsub.s32 0, %v70
    %v72 = vrot.slane %v67, %v71
    %vm74 = vcmask 48128
    %v76 = vsel %vm74, %v65, 0
    %vm78 = vcmask 1045504
    %v80 = vsel %vm78, %v66, 0
    %82 = vmatprep.subr.mxu0 0.0
    %83 = vmatpush1.msra.mxu0 %v80
    %84 = vmatprep.subr.mxu0 0.0
    %85 = vmatpush1.msra.mxu0 0.0
    %86 = vmatprep.subr.mxu0 0.0
    %87 = vmatpush1.msra.mxu0 0.0
    %88 = vmatprep.subr.mxu0 0.0
    %89 = vmatpush1.msra.mxu0 0.0
    %90 = vmatprep.subr.mxu0 0.0
    %91 = vmatpush1.msra.mxu0 0.0
    %92 = vmatprep.subr.mxu0 0.0
    %93 = vmatpush1.msra.mxu0 0.0
    %94 = vmatprep.subr.mxu0 0.0
    %95 = vmatpush1.msra.mxu0 0.0
    %96 = vmatprep.subr.mxu0 0.0
    %97 = vmatpush1.msra.mxu0 0.0
    %98 = vmatprep.subr.mxu0 0.0
    %99 = vmatpush1.msra.mxu0 0.0
    %100 = vmatprep.subr.mxu0 0.0
    %101 = vmatpush1.msra.mxu0 0.0
    %102 = vmatprep.subr.mxu0 0.0
    %103 = vmatpush1.msra.mxu0 0.0
    %104 = vmatprep.subr.mxu0 0.0
    %105 = vmatpush1.msra.mxu0 0.0
    %106 = vmatprep.subr.mxu0 0.0
    %107 = vmatpush1.msra.mxu0 0.0
    %108 = vmatprep.subr.mxu0 0.0
    %109 = vmatpush1.msra.mxu0 0.0
    %110 = vmatprep.subr.mxu0 0.0
    %111 = vmatpush1.msra.mxu0 0.0
    %112 = vmatprep.subr.mxu0 0.0
    %113 = vmatpush1.msra.mxu0 0.0
    %114 = vmatprep.subr.mxu0 0.0
    %115 = vmatpush1.msra.mxu0 0.0
    %116 = vmatprep.subr.mxu0 0.0
    %117 = vmatpush1.msra.mxu0 0.0
    %118 = vmatprep.subr.mxu0 0.0
    %119 = vmatpush1.msra.mxu0 0.0
    %120 = vmatprep.subr.mxu0 0.0
    %121 = vmatpush1.msra.mxu0 0.0
    %122 = vmatprep.subr.mxu0 0.0
    %123 = vmatpush1.msra.mxu0 0.0
    %124 = vmatprep.subr.mxu0 0.0
    %125 = vmatpush1.msra.mxu0 0.0
    %126 = vmatprep.subr.mxu0 0.0
    %127 = vmatpush1.msra.mxu0 0.0
    %128 = vmatprep.subr.mxu0 0.0
    %129 = vmatpush1.msra.mxu0 0.0
    %130 = vmatprep.subr.mxu0 0.0
    %131 = vmatpush1.msra.mxu0 0.0
    %132 = vmatprep.subr.mxu0 0.0
    %133 = vmatpush1.msra.mxu0 0.0
    %134 = vmatprep.subr.mxu0 0.0
    %135 = vmatpush1.msra.mxu0 0.0
    %136 = vmatprep.subr.mxu0 0.0
    %137 = vmatpush1.msra.mxu0 0.0
    %138 = vmatprep.subr.mxu0 0.0
    %139 = vmatpush1.msra.mxu0 0.0
    %140 = vmatprep.subr.mxu0 0.0
    %141 = vmatpush1.msra.mxu0 0.0
    %142 = vmatprep.subr.mxu0 0.0
    %143 = vmatpush1.msra.mxu0 0.0
    %144 = vmatprep.subr.mxu0 0.0
    %145 = vmatpush1.msra.mxu0 0.0
    %146 = vmatprep.mubr.f32.mxu0 0.0
    %147 = vmatmul.mubr.f32.gmra.mrb[0].mxu0 %v76
    %v148 = vpop.f32.mrb[0].mxu0
    %v149 = vadd.f32 %v72, %v148
    %v150 = vpop.f32.mrb[0].mxu0
    %151 = vdwg.mxu0
    %v152 = vmax.f32 %v149, 0.0
    %v153 = vld [vmem:[#allocation8] sm:$0xff]
    %v154 = vld [vmem:[#allocation8 + $0x8] sm:$0xff]
    %v155 = vld [vmem:[#allocation8 + $0x10] sm:$0xff]
    %v156 = vld [vmem:[#allocation8 + $0x18] sm:$0xff]
    %v157 = vld [vmem:[#allocation8 + $0x20] sm:$0xff]
    %v158 = vld [vmem:[#allocation8 + $0x28] sm:$0xff]
    %v159 = vld [vmem:[#allocation8 + $0x30] sm:$0xff]
    %v160 = vld [vmem:[#allocation8 + $0x38] sm:$0xff]
    %v161 = vld [vmem:[#allocation8 + $0x40] sm:$0xff]
    %v162 = vld [vmem:[#allocation8 + $0x48] sm:$0xff]
    %v163 = vld [vmem:[#allocation8 + $0x50] sm:$0xff]
    %v164 = vld [vmem:[#allocation8 + $0x58] sm:$0xff]
    %v165 = vld [vmem:[#allocation8 + $0x60] sm:$0xff]
    %v166 = vld [vmem:[#allocation8 + $0x68] sm:$0xff]
    %v167 = vld [vmem:[#allocation8 + $0x70] sm:$0xff]
    %v168 = vld [vmem:[#allocation8 + $0x78] sm:$0xff]
    %v169 = vld [vmem:[%s4] sm:$0x1]
    %v171 = vlaneseq
    %v172 = vshrl.u32 %v171, 7
    %v173 = vsub.s32 0, %v172
    %v174 = vrot.slane %v169, %v173
    %176 = vmatprep.subr.mxu0 0.0
    %177 = vmatpush1.msra.mxu0 %v153
    %178 = vmatprep.subr.mxu0 0.0
    %179 = vmatpush1.msra.mxu0 %v154
    %180 = vmatprep.subr.mxu0 0.0
    %181 = vmatpush1.msra.mxu0 %v155
    %182 = vmatprep.subr.mxu0 0.0
    %183 = vmatpush1.msra.mxu0 %v156
    %184 = vmatprep.subr.mxu0 0.0
    %185 = vmatpush1.msra.mxu0 %v157
    %186 = vmatprep.subr.mxu0 0.0
    %187 = vmatpush1.msra.mxu0 %v158
    %188 = vmatprep.subr.mxu0 0.0
    %189 = vmatpush1.msra.mxu0 %v159
    %190 = vmatprep.subr.mxu0 0.0
    %191 = vmatpush1.msra.mxu0 %v160
    %192 = vmatprep.subr.mxu0 0.0
    %193 = vmatpush1.msra.mxu0 %v161
    %194 = vmatprep.subr.mxu0 0.0
    %195 = vmatpush1.msra.mxu0 %v162
    %196 = vmatprep.subr.mxu0 0.0
    %197 = vmatpush1.msra.mxu0 %v163
    %198 = vmatprep.subr.mxu0 0.0
    %199 = vmatpush1.msra.mxu0 %v164
    %200 = vmatprep.subr.mxu0 0.0
    %201 = vmatpush1.msra.mxu0 %v165
    %202 = vmatprep.subr.mxu0 0.0
    %203 = vmatpush1.msra.mxu0 %v166
    %204 = vmatprep.subr.mxu0 0.0
    %205 = vmatpush1.msra.mxu0 %v167
    %206 = vmatprep.subr.mxu0 0.0
    %207 = vmatpush1.msra.mxu0 %v168
    %208 = vmatprep.subr.mxu0 0.0
    %209 = vmatpush1.msra.mxu0 0.0
    %210 = vmatprep.subr.mxu0 0.0
    %211 = vmatpush1.msra.mxu0 0.0
    %212 = vmatprep.subr.mxu0 0.0
    %213 = vmatpush1.msra.mxu0 0.0
    %214 = vmatprep.subr.mxu0 0.0
    %215 = vmatpush1.msra.mxu0 0.0
    %216 = vmatprep.subr.mxu0 0.0
    %217 = vmatpush1.msra.mxu0 0.0
    %218 = vmatprep.subr.mxu0 0.0
    %219 = vmatpush1.msra.mxu0 0.0
    %220 = vmatprep.subr.mxu0 0.0
    %221 = vmatpush1.msra.mxu0 0.0
    %222 = vmatprep.subr.mxu0 0.0
    %223 = vmatpush1.msra.mxu0 0.0
    %224 = vmatprep.subr.mxu0 0.0
    %225 = vmatpush1.msra.mxu0 0.0
    %226 = vmatprep.subr.mxu0 0.0
    %227 = vmatpush1.msra.mxu0 0.0
    %228 = vmatprep.subr.mxu0 0.0
    %229 = vmatpush1.msra.mxu0 0.0
    %230 = vmatprep.subr.mxu0 0.0
    %231 = vmatpush1.msra.mxu0 0.0
    %232 = vmatprep.subr.mxu0 0.0
    %233 = vmatpush1.msra.mxu0 0.0
    %234 = vmatprep.subr.mxu0 0.0
    %235 = vmatpush1.msra.mxu0 0.0
    %236 = vmatprep.subr.mxu0 0.0
    %237 = vmatpush1.msra.mxu0 0.0
    %238 = vmatprep.subr.mxu0 0.0
    %239 = vmatpush1.msra.mxu0 0.0
    %240 = vmatprep.mubr.f32.mxu0 0.0
    %241 = vmatmul.mubr.f32.gmra.mrb[0].mxu0 %v152
    %v242 = vpop.f32.mrb[0].mxu0
    %v243 = vadd.f32 %v174, %v242
    %v244 = vpop.f32.mrb[0].mxu0
    %245 = vdwg.mxu0
    %v246 = vmax.f32 %v243, 0.0
    %v247 = vld [vmem:[%s5] sm:$0x1]
    %v249 = vlaneseq
    %v250 = vshrl.u32 %v249, 7
    %v251 = vsub.s32 0, %v250
    %v252 = vrot.slane %v247, %v251
    %v254 = vmul.f32 %v246, %v252
    %255 = vadd.xlane.f32.xlu0 %v254
    %v256 = vpop.xlane.xlu0 %255
    %s257 = sld [smem:[#allocation2]]
    %v258 = vstv %s257
    %v259 = vadd.f32 %v256, %v258
    %v261 = vlaneseq
    %v262 = vand.u32 %v261, 127
    %v263 = vlaneseq
    %v264 = vshrl.u32 %v263, 7
    %v265 = vsub.s32 %v262, %v264
    %v266 = vrot.slane %v259, %v265
    %vm268 = vcmask 57344
    %269 = vst.msk [vmem:[#allocation9] sm:$0x1] %vm268, %v266
    // Predicated region
    $region42: #{tpu_custom_call.1} parent=1 // pred_check
      _
    $region43: #{tpu_custom_call.1} parent=1 // pred_check_branch
      %271 = sbr.rel (0) target = $region45
    $region44: #{tpu_custom_call.1} parent=1 // pred_region
      %s273 = ssub.s32 16, 16
      %274 = vsyncadd [#allocation5], %s273
      %s276 = sshll.u32 [#allocation9], 4
      %s277 = int_to_ptr.vmem [resolvable:$true] %s276
      %279 = dma.vmem_to_hbm [thread:$0]  %s277, 16, %s7, [#allocation5]
    $region45: #{tpu_custom_call.1} parent=1 // pred_fallthru
      _
    // Predicated region
    $region46: #{tpu_custom_call.1} parent=1 // pred_check
      _
    $region47: #{tpu_custom_call.1} parent=1 // pred_check_branch
      %281 = sbr.rel (0) target = $region49
    $region48: #{tpu_custom_call.1} parent=1 // pred_region
      %282 = dma.done [#allocation5], 16
    $region49: #{tpu_custom_call.1} parent=1 // pred_fallthru
      _
    %283 = vsyncpa [#allocation4], 1
    %284 = vsyncpa [#allocation7], 1
    %285 = vsyncpa [#allocation5], 1

// kernel: tpu_custom_call.1
$region0: #{tpu_custom_call.1}
  #allocation0 [shape = 'u32[]', space=smem, size = 0x4, offset = 0x4, fixed_abs, tag = 'smem constant byte address 0x4 - core index']
  #allocation1 [shape = 'u32[144,128]{1,0:T(1,128)}', space=vmem, size = 0x12000, scoped, tag = 'internal scratch']
  #allocation2 [shape = 'f32[1]{0:T(128)S(6)}', space=smem, size = 0x200, scoped, tag = 'scoped memory for tpu_custom_call.1']
  %s0 = inlined_call_operand.hbm [shape: f32[8,6], index: 0, kind: input, shape index: {}]
  %s1 = inlined_call_operand.hbm [shape: f32[6,128], index: 1, kind: input, shape index: {}]
  %s2 = inlined_call_operand.vmem [shape: f32[1,128], index: 2, kind: input, shape index: {}]
  %s3 = inlined_call_operand.hbm [shape: f32[128,128], index: 3, kind: input, shape index: {}]
  %s4 = inlined_call_operand.vmem [shape: f32[1,128], index: 4, kind: input, shape index: {}]
  %s5 = inlined_call_operand.vmem [shape: f32[1,128], index: 5, kind: input, shape index: {}]
  %s6 = inlined_call_operand.<no memory space> [shape: f32[1], index: 6, kind: input, shape index: {}]
  %s7 = inlined_call_operand.hbm [shape: f32[1,8], index: 7, kind: output, shape index: {}]
  %s8 = sld [smem:[#allocation0]]
  $region50: #{tpu_custom_call.1} parent=0
    _
  %s10 = ssub.s32 1, %s8
  %s11 = scalar_select 0, %s10, %s8
  %12 = sst [smem:[#allocation2]] %s6
  $region1: #{tpu_custom_call.1} parent=0
    #allocation3 [shape = 'u8[4096]{0}', space=vmem, size = 0x1000, scoped, tag = 'input window, operand 0, single buffered']
    #allocation4 [shape = 's32[1]{0}', space=sflag, size = 0x4, scoped, tag = 'scoped memory for tpu_custom_call.1']
    #allocation5 [shape = 's32[1]{0}', space=sflag, size = 0x4, scoped, tag = 'scoped memory for tpu_custom_call.1']
    #allocation6 [shape = 'u8[4096]{0}', space=vmem, size = 0x1000, scoped, tag = 'input window, operand 1, single buffered']
    #allocation7 [shape = 's32[1]{0}', space=sflag, size = 0x4, scoped, tag = 'scoped memory for tpu_custom_call.1']
    #allocation8 [shape = 'u8[65536]{0}', space=vmem, size = 0x10000, scoped, tag = 'input window, operand 3, single buffered']
    #allocation9 [shape = 'u8[512]{0}', space=vmem, size = 0x400, scoped, tag = 'output window, operand 0, single buffered']
    %13 = vsyncpa [#allocation4], 0
    %14 = vsyncpa [#allocation7], 0
    %15 = vsyncpa [#allocation5], 0
    // Predicated region
    $region2: #{tpu_custom_call.1} parent=1 // pred_check
      _
    $region3: #{tpu_custom_call.1} parent=1 // pred_check_branch
      %17 = sbr.rel (0) target = $region5
    $region4: #{tpu_custom_call.1} parent=1 // pred_region
      %s19 = ssub.s32 128, 128
      %20 = vsyncadd [#allocation4], %s19
      %s22 = sshll.u32 [#allocation3], 4
      %s23 = int_to_ptr.vmem [resolvable:$true] %s22
      %25 = dma.hbm_to_vmem [thread:$0]  %s0, 128, %s23, [#allocation4]
    $region5: #{tpu_custom_call.1} parent=1 // pred_fallthru
      _
    // Predicated region
    $region6: #{tpu_custom_call.1} parent=1 // pred_check
      _
    $region7: #{tpu_custom_call.1} parent=1 // pred_check_branch
      %27 = sbr.rel (0) target = $region9
    $region8: #{tpu_custom_call.1} parent=1 // pred_region
      %s29 = ssub.s32 128, 128
      %30 = vsyncadd [#allocation7], %s29
      %s32 = sshll.u32 [#allocation6], 4
      %s33 = int_to_ptr.vmem [resolvable:$true] %s32
      %35 = dma.hbm_to_vmem [thread:$0]  %s1, 128, %s33, [#allocation7]
    $region9: #{tpu_custom_call.1} parent=1 // pred_fallthru
      _
    // Predicated region
    $region10: #{tpu_custom_call.1} parent=1 // pred_check
      _
    $region11: #{tpu_custom_call.1} parent=1 // pred_check_branch
      %37 = sbr.rel (0) target = $region13
    $region12: #{tpu_custom_call.1} parent=1 // pred_region
      _
    $region13: #{tpu_custom_call.1} parent=1 // pred_fallthru
      _
    // Predicated region
    $region14: #{tpu_custom_call.1} parent=1 // pred_check
      _
    $region15: #{tpu_custom_call.1} parent=1 // pred_check_branch
      %39 = sbr.rel (0) target = $region17
    $region16: #{tpu_custom_call.1} parent=1 // pred_region
      %s41 = ssub.s32 2048, 2048
      %42 = vsyncadd [#allocation7], %s41
      %s43 = sshll.u32 [#allocation8], 4
      %s44 = int_to_ptr.vmem [resolvable:$true] %s43
      %49 = dma.hbm_to_vmem [thread:$0]  %s3, 2048, %s44, [#allocation7], 128, 128, 8
    $region17: #{tpu_custom_call.1} parent=1 // pred_fallthru
      _
    // Predicated region
    $region18: #{tpu_custom_call.1} parent=1 // pred_check
      _
    $region19: #{tpu_custom_call.1} parent=1 // pred_check_branch
      %51 = sbr.rel (0) target = $region21
    $region20: #{tpu_custom_call.1} parent=1 // pred_region
      _
    $region21: #{tpu_custom_call.1} parent=1 // pred_fallthru
      _
    // Predicated region
    $region22: #{tpu_custom_call.1} parent=1 // pred_check
      _
    $region23: #{tpu_custom_call.1} parent=1 // pred_check_branch
      %53 = sbr.rel (0) target = $region25
    $region24: #{tpu_custom_call.1} parent=1 // pred_region
      _
    $region25: #{tpu_custom_call.1} parent=1 // pred_fallthru
      _
    // Predicated region
    $region26: #{tpu_custom_call.1} parent=1 // pred_check
      _
    $region27: #{tpu_custom_call.1} parent=1 // pred_check_branch
      %55 = sbr.rel (0) target = $region29
    $region28: #{tpu_custom_call.1} parent=1 // pred_region
      _
    $region29: #{tpu_custom_call.1} parent=1 // pred_fallthru
      _
    // Predicated region
    $region30: #{tpu_custom_call.1} parent=1 // pred_check
      _
    $region31: #{tpu_custom_call.1} parent=1 // pred_check_branch
      %57 = sbr.rel (0) target = $region33
    $region32: #{tpu_custom_call.1} parent=1 // pred_region
      %58 = dma.done [#allocation4], 128
    $region33: #{tpu_custom_call.1} parent=1 // pred_fallthru
      _
    // Predicated region
    $region34: #{tpu_custom_call.1} parent=1 // pred_check
      _
    $region35: #{tpu_custom_call.1} parent=1 // pred_check_branch
      %60 = sbr.rel (0) target = $region37
    $region36: #{tpu_custom_call.1} parent=1 // pred_region
      %61 = dma.done [#allocation7], 128
    $region37: #{tpu_custom_call.1} parent=1 // pred_fallthru
      _
    // Predicated region
    $region38: #{tpu_custom_call.1} parent=1 // pred_check
      _
    $region39: #{tpu_custom_call.1} parent=1 // pred_check_branch
      %63 = sbr.rel (0) target = $region41
    $region40: #{tpu_custom_call.1} parent=1 // pred_region
      %64 = dma.done [#allocation7], 2048
    $region41: #{tpu_custom_call.1} parent=1 // pred_fallthru
      _
    %v65 = vld [vmem:[#allocation3] sm:$0xff]
    %v66 = vld [vmem:[#allocation6] sm:$0x3f]
    %v67 = vld [vmem:[%s2] sm:$0x1]
    %v69 = vlaneseq
    %v70 = vshrl.u32 %v69, 7
    %v71 = vsub.s32 0, %v70
    %v72 = vrot.slane %v67, %v71
    %vm74 = vcmask 48128
    %v76 = vsel %vm74, %v65, 0
    %vm78 = vcmask 1045504
    %v80 = vsel %vm78, %v66, 0
    %82 = vmatprep.subr.mxu0 0.0
    %83 = vmatpush1.msra.mxu0 %v80
    %84 = vmatprep.subr.mxu0 0.0
    %85 = vmatpush1.msra.mxu0 0.0
    %86 = vmatprep.subr.mxu0 0.0
    %87 = vmatpush1.msra.mxu0 0.0
    %88 = vmatprep.subr.mxu0 0.0
    %89 = vmatpush1.msra.mxu0 0.0
    %90 = vmatprep.subr.mxu0 0.0
    %91 = vmatpush1.msra.mxu0 0.0
    %92 = vmatprep.subr.mxu0 0.0
    %93 = vmatpush1.msra.mxu0 0.0
    %94 = vmatprep.subr.mxu0 0.0
    %95 = vmatpush1.msra.mxu0 0.0
    %96 = vmatprep.subr.mxu0 0.0
    %97 = vmatpush1.msra.mxu0 0.0
    %98 = vmatprep.subr.mxu0 0.0
    %99 = vmatpush1.msra.mxu0 0.0
    %100 = vmatprep.subr.mxu0 0.0
    %101 = vmatpush1.msra.mxu0 0.0
    %102 = vmatprep.subr.mxu0 0.0
    %103 = vmatpush1.msra.mxu0 0.0
    %104 = vmatprep.subr.mxu0 0.0
    %105 = vmatpush1.msra.mxu0 0.0
    %106 = vmatprep.subr.mxu0 0.0
    %107 = vmatpush1.msra.mxu0 0.0
    %108 = vmatprep.subr.mxu0 0.0
    %109 = vmatpush1.msra.mxu0 0.0
    %110 = vmatprep.subr.mxu0 0.0
    %111 = vmatpush1.msra.mxu0 0.0
    %112 = vmatprep.subr.mxu0 0.0
    %113 = vmatpush1.msra.mxu0 0.0
    %114 = vmatprep.subr.mxu0 0.0
    %115 = vmatpush1.msra.mxu0 0.0
    %116 = vmatprep.subr.mxu0 0.0
    %117 = vmatpush1.msra.mxu0 0.0
    %118 = vmatprep.subr.mxu0 0.0
    %119 = vmatpush1.msra.mxu0 0.0
    %120 = vmatprep.subr.mxu0 0.0
    %121 = vmatpush1.msra.mxu0 0.0
    %122 = vmatprep.subr.mxu0 0.0
    %123 = vmatpush1.msra.mxu0 0.0
    %124 = vmatprep.subr.mxu0 0.0
    %125 = vmatpush1.msra.mxu0 0.0
    %126 = vmatprep.subr.mxu0 0.0
    %127 = vmatpush1.msra.mxu0 0.0
    %128 = vmatprep.subr.mxu0 0.0
    %129 = vmatpush1.msra.mxu0 0.0
    %130 = vmatprep.subr.mxu0 0.0
    %131 = vmatpush1.msra.mxu0 0.0
    %132 = vmatprep.subr.mxu0 0.0
    %133 = vmatpush1.msra.mxu0 0.0
    %134 = vmatprep.subr.mxu0 0.0
    %135 = vmatpush1.msra.mxu0 0.0
    %136 = vmatprep.subr.mxu0 0.0
    %137 = vmatpush1.msra.mxu0 0.0
    %138 = vmatprep.subr.mxu0 0.0
    %139 = vmatpush1.msra.mxu0 0.0
    %140 = vmatprep.subr.mxu0 0.0
    %141 = vmatpush1.msra.mxu0 0.0
    %142 = vmatprep.subr.mxu0 0.0
    %143 = vmatpush1.msra.mxu0 0.0
    %144 = vmatprep.subr.mxu0 0.0
    %145 = vmatpush1.msra.mxu0 0.0
    %146 = vmatprep.mubr.f32.mxu0 0.0
    %147 = vmatmul.mubr.f32.gmra.mrb[0].mxu0 %v76
    %v148 = vpop.f32.mrb[0].mxu0
    %v149 = vadd.f32 %v72, %v148
    %v150 = vpop.f32.mrb[0].mxu0
    %151 = vdwg.mxu0
    %v152 = vmax.f32 %v149, 0.0
    %v153 = vld [vmem:[#allocation8] sm:$0xff]
    %v154 = vld [vmem:[#allocation8 + $0x8] sm:$0xff]
    %v155 = vld [vmem:[#allocation8 + $0x10] sm:$0xff]
    %v156 = vld [vmem:[#allocation8 + $0x18] sm:$0xff]
    %v157 = vld [vmem:[#allocation8 + $0x20] sm:$0xff]
    %v158 = vld [vmem:[#allocation8 + $0x28] sm:$0xff]
    %v159 = vld [vmem:[#allocation8 + $0x30] sm:$0xff]
    %v160 = vld [vmem:[#allocation8 + $0x38] sm:$0xff]
    %v161 = vld [vmem:[#allocation8 + $0x40] sm:$0xff]
    %v162 = vld [vmem:[#allocation8 + $0x48] sm:$0xff]
    %v163 = vld [vmem:[#allocation8 + $0x50] sm:$0xff]
    %v164 = vld [vmem:[#allocation8 + $0x58] sm:$0xff]
    %v165 = vld [vmem:[#allocation8 + $0x60] sm:$0xff]
    %v166 = vld [vmem:[#allocation8 + $0x68] sm:$0xff]
    %v167 = vld [vmem:[#allocation8 + $0x70] sm:$0xff]
    %v168 = vld [vmem:[#allocation8 + $0x78] sm:$0xff]
    %v169 = vld [vmem:[%s4] sm:$0x1]
    %v171 = vlaneseq
    %v172 = vshrl.u32 %v171, 7
    %v173 = vsub.s32 0, %v172
    %v174 = vrot.slane %v169, %v173
    %176 = vmatprep.subr.mxu0 0.0
    %177 = vmatpush1.msra.mxu0 %v153
    %178 = vmatprep.subr.mxu0 0.0
    %179 = vmatpush1.msra.mxu0 %v154
    %180 = vmatprep.subr.mxu0 0.0
    %181 = vmatpush1.msra.mxu0 %v155
    %182 = vmatprep.subr.mxu0 0.0
    %183 = vmatpush1.msra.mxu0 %v156
    %184 = vmatprep.subr.mxu0 0.0
    %185 = vmatpush1.msra.mxu0 %v157
    %186 = vmatprep.subr.mxu0 0.0
    %187 = vmatpush1.msra.mxu0 %v158
    %188 = vmatprep.subr.mxu0 0.0
    %189 = vmatpush1.msra.mxu0 %v159
    %190 = vmatprep.subr.mxu0 0.0
    %191 = vmatpush1.msra.mxu0 %v160
    %192 = vmatprep.subr.mxu0 0.0
    %193 = vmatpush1.msra.mxu0 %v161
    %194 = vmatprep.subr.mxu0 0.0
    %195 = vmatpush1.msra.mxu0 %v162
    %196 = vmatprep.subr.mxu0 0.0
    %197 = vmatpush1.msra.mxu0 %v163
    %198 = vmatprep.subr.mxu0 0.0
    %199 = vmatpush1.msra.mxu0 %v164
    %200 = vmatprep.subr.mxu0 0.0
    %201 = vmatpush1.msra.mxu0 %v165
    %202 = vmatprep.subr.mxu0 0.0
    %203 = vmatpush1.msra.mxu0 %v166
    %204 = vmatprep.subr.mxu0 0.0
    %205 = vmatpush1.msra.mxu0 %v167
    %206 = vmatprep.subr.mxu0 0.0
    %207 = vmatpush1.msra.mxu0 %v168
    %208 = vmatprep.subr.mxu0 0.0
    %209 = vmatpush1.msra.mxu0 0.0
    %210 = vmatprep.subr.mxu0 0.0
    %211 = vmatpush1.msra.mxu0 0.0
    %212 = vmatprep.subr.mxu0 0.0
    %213 = vmatpush1.msra.mxu0 0.0
    %214 = vmatprep.subr.mxu0 0.0
    %215 = vmatpush1.msra.mxu0 0.0
    %216 = vmatprep.subr.mxu0 0.0
    %217 = vmatpush1.msra.mxu0 0.0
    %218 = vmatprep.subr.mxu0 0.0
    %219 = vmatpush1.msra.mxu0 0.0
    %220 = vmatprep.subr.mxu0 0.0
    %221 = vmatpush1.msra.mxu0 0.0
    %222 = vmatprep.subr.mxu0 0.0
    %223 = vmatpush1.msra.mxu0 0.0
    %224 = vmatprep.subr.mxu0 0.0
    %225 = vmatpush1.msra.mxu0 0.0
    %226 = vmatprep.subr.mxu0 0.0
    %227 = vmatpush1.msra.mxu0 0.0
    %228 = vmatprep.subr.mxu0 0.0
    %229 = vmatpush1.msra.mxu0 0.0
    %230 = vmatprep.subr.mxu0 0.0
    %231 = vmatpush1.msra.mxu0 0.0
    %232 = vmatprep.subr.mxu0 0.0
    %233 = vmatpush1.msra.mxu0 0.0
    %234 = vmatprep.subr.mxu0 0.0
    %235 = vmatpush1.msra.mxu0 0.0
    %236 = vmatprep.subr.mxu0 0.0
    %237 = vmatpush1.msra.mxu0 0.0
    %238 = vmatprep.subr.mxu0 0.0
    %239 = vmatpush1.msra.mxu0 0.0
    %240 = vmatprep.mubr.f32.mxu0 0.0
    %241 = vmatmul.mubr.f32.gmra.mrb[0].mxu0 %v152
    %v242 = vpop.f32.mrb[0].mxu0
    %v243 = vadd.f32 %v174, %v242
    %v244 = vpop.f32.mrb[0].mxu0
    %245 = vdwg.mxu0
    %v246 = vmax.f32 %v243, 0.0
    %v247 = vld [vmem:[%s5] sm:$0x1]
    %v249 = vlaneseq
    %v250 = vshrl.u32 %v249, 7
    %v251 = vsub.s32 0, %v250
    %v252 = vrot.slane %v247, %v251
    %v254 = vmul.f32 %v246, %v252
    %255 = vadd.xlane.f32.xlu0 %v254
    %v256 = vpop.xlane.xlu0 %255
    %s257 = sld [smem:[#allocation2]]
    %v258 = vstv %s257
    %v259 = vadd.f32 %v256, %v258
    %v261 = vlaneseq
    %v262 = vand.u32 %v261, 127
    %v263 = vlaneseq
    %v264 = vshrl.u32 %v263, 7
    %v265 = vsub.s32 %v262, %v264
    %v266 = vrot.slane %v259, %v265
    %vm268 = vcmask 57344
    %269 = vst.msk [vmem:[#allocation9] sm:$0x1] %vm268, %v266
    // Predicated region
    $region42: #{tpu_custom_call.1} parent=1 // pred_check
      _
    $region43: #{tpu_custom_call.1} parent=1 // pred_check_branch
      %271 = sbr.rel (0) target = $region45
    $region44: #{tpu_custom_call.1} parent=1 // pred_region
      %s273 = ssub.s32 16, 16
      %274 = vsyncadd [#allocation5], %s273
      %s276 = sshll.u32 [#allocation9], 4
      %s277 = int_to_ptr.vmem [resolvable:$true] %s276
      %279 = dma.vmem_to_hbm [thread:$0]  %s277, 16, %s7, [#allocation5]
    $region45: #{tpu_custom_call.1} parent=1 // pred_fallthru
      _
    // Predicated region
    $region46: #{tpu_custom_call.1} parent=1 // pred_check
      _
    $region47: #{tpu_custom_call.1} parent=1 // pred_check_branch
      %281 = sbr.rel (0) target = $region49
    $region48: #{tpu_custom_call.1} parent=1 // pred_region
      %282 = dma.done [#allocation5], 16
    $region49: #{tpu_custom_call.1} parent=1 // pred_fallthru
      _
    %283 = vsyncpa [#allocation4], 1
    %284 = vsyncpa [#allocation7], 1
    %285 = vsyncpa [#allocation5], 1

</llo_original>
